<compile_context>
chip_gen: v7x
topology: tpu7x:2x2x1
jax: 0.10.0
libtpu: 0.0.40
codegen_flags: <defaults>
</compile_context>

<pallas_src>
import functools

import jax
import jax.numpy as jnp
from jax import lax
from jax.experimental import pallas as pl
from jax.experimental.pallas import tpu as pltpu


_DEFAULT_TILE_N = 1024


def _round_up(x, m):
    return (x + m - 1) // m * m


def _dfl_partial_kernel(logits_ref, targets_ref, out_ref, *, tile_n, n_valid, masked):
    """Partial (per-tile) sum of DFL per-row losses.

    per_row = lse(x) - sum_j x[j] * max(0, 1 - |j - t|)
            = CE(x, floor(t)) * w_left + CE(x, floor(t)+1) * w_right
    """
    x = logits_ref[...].astype(jnp.float32)        # (tile_n, C), f32 math everywhere
    t = targets_ref[...].astype(jnp.float32)       # (tile_n, 1)
    tn, c = x.shape

    # Triangular interpolation weight over the class (lane) axis.
    col = lax.broadcasted_iota(jnp.int32, (tn, c), 1).astype(jnp.float32)
    w = jnp.maximum(0.0, 1.0 - jnp.abs(col - t))   # (tile_n, C)

    # Numerically-stable log-sum-exp over lanes.
    m = jnp.max(x, axis=1, keepdims=True)                               # (tile_n, 1)
    lse = m + jnp.log(jnp.sum(jnp.exp(x - m), axis=1, keepdims=True))   # (tile_n, 1)

    per_row = lse - jnp.sum(x * w, axis=1, keepdims=True)               # (tile_n, 1)

    if masked:
        # Zero the rows that only exist because the last grid block is ragged.
        # jnp.where *selects*, so garbage/NaN in padded edge rows never leaks.
        row = (lax.broadcasted_iota(jnp.int32, (tn, 1), 0)
               + pl.program_id(0) * tile_n)
        per_row = jnp.where(row < n_valid, per_row, 0.0)

    out_ref[...] = jnp.full((1, 1, 1), jnp.sum(per_row), dtype=jnp.float32)


def distributed_focal_loss_pallas(logits, targets, *, loss_weight=1.0,
                                  reduction="mean", tile_n=_DEFAULT_TILE_N):
    """logits: (N, C) float32/bf16, targets: (N,) float in [0, C-1). Returns scalar."""
    n, c = logits.shape
    targets2d = targets.reshape(n, 1)

    # Tile size: multiple of 8 sublanes, no larger than the (8-rounded) row count.
    tn = _round_up(min(int(tile_n), _round_up(n, 8)), 8)
    num_blocks = pl.cdiv(n, tn)
    masked = (n % tn) != 0

    kernel = functools.partial(
        _dfl_partial_kernel, tile_n=tn, n_valid=n, masked=masked)

    partials = pl.pallas_call(
        kernel,
        out_shape=jax.ShapeDtypeStruct((num_blocks, 1, 1), jnp.float32),
        grid_spec=pltpu.PrefetchScalarGridSpec(
            num_scalar_prefetch=0,
            grid=(num_blocks,),
            in_specs=[
                pl.BlockSpec((tn, c), lambda i: (i, 0)),   # native dtype, cast in kernel
                pl.BlockSpec((tn, 1), lambda i: (i, 0)),
            ],
            out_specs=pl.BlockSpec((1, 1, 1), lambda i: (i, 0, 0)),
        ),
        compiler_params=pltpu.CompilerParams(
            dimension_semantics=("parallel",)),   # independent partials -> both v7x TCs
        cost_estimate=pl.CostEstimate(
            flops=6 * n * c,
            transcendentals=n * (c + 1),
            bytes_accessed=(n * c * logits.dtype.itemsize
                            + n * targets2d.dtype.itemsize
                            + int(num_blocks) * 4),
        ),
    )(logits, targets2d)

    total = jnp.sum(partials)
    if reduction == "mean":
        loss = total / jnp.float32(n)
    elif reduction == "sum":
        loss = total
    else:
        raise ValueError(f"unsupported reduction: {reduction}")
    # loss_weight applied in the wrapper (no kernel recompile when it changes).
    return jnp.float32(loss_weight) * loss


class DistributedFocalLoss:
    """JAX/Pallas port of the PyTorch DistributedFocalLoss module."""

    def __init__(self, reduction: str = "mean", loss_weight: float = 1.0):
        self.reduction = reduction
        self.loss_weight = loss_weight

    def __call__(self, inputs, targets):
        # Matches the PyTorch forward exactly: it always uses reduction='mean'
        # inside distributed_focal_loss, regardless of the ctor argument.
        return distributed_focal_loss_pallas(
            inputs, targets, loss_weight=self.loss_weight, reduction="mean")


def _reference(logits, targets, loss_weight=1.0):
    # Pure-JAX reference for verification.
    dl = targets.astype(jnp.int32)
    dr = dl + 1
    wl = dr.astype(jnp.float32) - targets.astype(jnp.float32)
    wr = targets.astype(jnp.float32) - dl.astype(jnp.float32)
    logp = jax.nn.log_softmax(logits.astype(jnp.float32), axis=-1)
    ce_l = -jnp.take_along_axis(logp, dl[:, None], axis=1)[:, 0]
    ce_r = -jnp.take_along_axis(logp, dr[:, None], axis=1)[:, 0]
    return loss_weight * jnp.mean(ce_l * wl + ce_r * wr)


if __name__ == "__main__":
    key = jax.random.PRNGKey(0)
    k1, k2, k3, k4 = jax.random.split(key, 4)

    # Small DFL-style shapes: N rows of class logits, C regression bins.
    N, C = 64, 16
    logits = jax.random.normal(k1, (N, C), dtype=jnp.float32)
    # Continuous targets in [0, C-1): dis_right = floor(t)+1 stays in-range.
    targets = jax.random.uniform(
        k2, (N,), dtype=jnp.float32, minval=0.0, maxval=float(C - 1) - 1e-3)

    loss_fn = DistributedFocalLoss(reduction="mean", loss_weight=1.0)
    out = jax.block_until_ready(loss_fn(logits, targets))
    ref = _reference(logits, targets, loss_weight=1.0)
    assert jnp.allclose(out, ref, rtol=1e-5, atol=1e-5), (out, ref)

    # Exercise the multi-block grid + ragged-last-block masking path.
    N2 = 100
    logits2 = jax.random.normal(k3, (N2, C), dtype=jnp.float32)
    targets2 = jax.random.uniform(
        k4, (N2,), dtype=jnp.float32, minval=0.0, maxval=float(C - 1) - 1e-3)
    out2 = jax.block_until_ready(
        distributed_focal_loss_pallas(logits2, targets2, loss_weight=0.5, tile_n=32))
    ref2 = _reference(logits2, targets2, loss_weight=0.5)
    assert jnp.allclose(out2, ref2, rtol=1e-5, atol=1e-5), (out2, ref2)

    # Exercise the native-dtype (bf16) streaming path.
    logits3 = logits2.astype(jnp.bfloat16)
    out3 = jax.block_until_ready(
        distributed_focal_loss_pallas(logits3, targets2, loss_weight=1.0, tile_n=32))
    ref3 = _reference(logits3, targets2, loss_weight=1.0)
    assert jnp.allclose(out3, ref3, rtol=1e-3, atol=1e-3), (out3, ref3)

    print("KERNEL_OK")
</pallas_src>

<mosaic_0001>
module attributes {stable_mosaic.version = 11 : i64} {
  func.func @_dfl_partial_kernel(%arg0: i32, %arg1: memref<64x16xf32, #tpu.memory_space<vmem>>, %arg2: memref<64x1xf32, #tpu.memory_space<vmem>>, %arg3: memref<1x1x1xf32, #tpu.memory_space<vmem>>) attributes {dimension_semantics = [#tpu.dimension_semantics<parallel>], iteration_bounds = array<i64: 1>, scalar_prefetch = 0 : i64, scratch_operands = 0 : i64, tpu.core_type = #tpu.core_type<tc>, window_params = [{transform_indices = @transform_0, window_bounds = array<i64: 64, 16>}, {transform_indices = @transform_1, window_bounds = array<i64: 64, 1>}, {transform_indices = @transform_2, window_bounds = array<i64: 1, 1, 1>}]} {
    %c0 = arith.constant 0 : index
    %c0_0 = arith.constant 0 : index
    %0 = vector.load %arg1[%c0, %c0_0] : memref<64x16xf32, #tpu.memory_space<vmem>>, vector<64x16xf32>
    %c0_1 = arith.constant 0 : index
    %c0_2 = arith.constant 0 : index
    %1 = vector.load %arg2[%c0_1, %c0_2] : memref<64x1xf32, #tpu.memory_space<vmem>>, vector<64x1xf32>
    %2 = tpu.iota {dimensions = array<i32: 1>} : vector<64x16xi32>
    %3 = arith.sitofp %2 : vector<64x16xi32> to vector<64x16xf32>
    %4 = vector.broadcast %1 : vector<64x1xf32> to vector<64x16xf32>
    %5 = arith.subf %3, %4 : vector<64x16xf32>
    %6 = math.absf %5 : vector<64x16xf32>
    %cst = arith.constant 1.000000e+00 : f32
    %7 = vector.broadcast %cst : f32 to vector<64x16xf32>
    %8 = arith.subf %7, %6 : vector<64x16xf32>
    %cst_3 = arith.constant 0.000000e+00 : f32
    %9 = vector.broadcast %cst_3 : f32 to vector<64x16xf32>
    %10 = arith.maximumf %9, %8 : vector<64x16xf32>
    %cst_4 = arith.constant dense<0xFF800000> : vector<64xf32>
    %11 = vector.multi_reduction <maximumf>, %0, %cst_4 [1] : vector<64x16xf32> to vector<64xf32>
    %12 = vector.shape_cast %11 : vector<64xf32> to vector<64x1xf32>
    %13 = vector.broadcast %12 : vector<64x1xf32> to vector<64x16xf32>
    %14 = arith.subf %0, %13 : vector<64x16xf32>
    %15 = math.exp %14 : vector<64x16xf32>
    %cst_5 = arith.constant dense<0.000000e+00> : vector<64xf32>
    %16 = vector.multi_reduction <add>, %15, %cst_5 [1] : vector<64x16xf32> to vector<64xf32>
    %17 = vector.shape_cast %16 : vector<64xf32> to vector<64x1xf32>
    %18 = math.log %17 : vector<64x1xf32>
    %19 = arith.addf %12, %18 : vector<64x1xf32>
    %20 = arith.mulf %0, %10 : vector<64x16xf32>
    %cst_6 = arith.constant dense<0.000000e+00> : vector<64xf32>
    %21 = vector.multi_reduction <add>, %20, %cst_6 [1] : vector<64x16xf32> to vector<64xf32>
    %22 = vector.shape_cast %21 : vector<64xf32> to vector<64x1xf32>
    %23 = arith.subf %19, %22 : vector<64x1xf32>
    %24 = vector.shape_cast %23 : vector<64x1xf32> to vector<1x64x1xf32>
    %cst_7 = arith.constant dense<0.000000e+00> : vector<1xf32>
    %25 = vector.multi_reduction <add>, %24, %cst_7 [1, 2] : vector<1x64x1xf32> to vector<1xf32>
    %26 = vector.shape_cast %25 : vector<1xf32> to vector<1x1x1xf32>
    %27 = vector.extract %26[0, 0, 0] : f32 from vector<1x1x1xf32>
    %28 = vector.broadcast %27 : f32 to vector<1x1x1xf32>
    %c0_8 = arith.constant 0 : index
    %c0_9 = arith.constant 0 : index
    %c0_10 = arith.constant 0 : index
    %29 = vector.load %arg3[%c0_8, %c0_9, %c0_10] : memref<1x1x1xf32, #tpu.memory_space<vmem>>, vector<1x1x1xf32>
    tpu.vector_store %arg3[%c0_8, %c0_9, %c0_10], %28 {strides = array<i32>} : memref<1x1x1xf32, #tpu.memory_space<vmem>>, vector<1x1x1xf32>,
    return
  }
  func.func @transform_0(%arg0: i32) -> (i32, i32) {
    %c0_i32 = arith.constant 0 : i32
    %c0_i32_0 = arith.constant 0 : i32
    return %arg0, %c0_i32 : i32, i32
  }
  func.func @transform_1(%arg0: i32) -> (i32, i32) {
    %c0_i32 = arith.constant 0 : i32
    %c0_i32_0 = arith.constant 0 : i32
    return %arg0, %c0_i32 : i32, i32
  }
  func.func @transform_2(%arg0: i32) -> (i32, i32, i32) {
    %c0_i32 = arith.constant 0 : i32
    %c0_i32_0 = arith.constant 0 : i32
    %c0_i32_1 = arith.constant 0 : i32
    return %arg0, %c0_i32, %c0_i32_0 : i32, i32, i32
  }
}

</mosaic_0001>

<llo_original>
// kernel: tpu_custom_call.1
$region0: #{tpu_custom_call.1}
  #allocation0 [shape = 'u32[]', space=smem, size = 0x4, offset = 0x4, fixed_abs, tag = 'smem constant byte address 0x4 - core index']
  #allocation1 [shape = 'u32[144,128]{1,0:T(1,128)}', space=vmem, size = 0x12000, scoped, tag = 'internal scratch']
  %s0 = inlined_call_operand.vmem [shape: f32[64,16], index: 0, kind: input, shape index: {}]
  %s1 = inlined_call_operand.vmem [shape: f32[64,1], index: 1, kind: input, shape index: {}]
  %s2 = inlined_call_operand.hbm [shape: f32[1,1,1], index: 2, kind: output, shape index: {}]
  %s3 = sld [smem:[#allocation0]]
  $region18: #{tpu_custom_call.1} parent=0
    _
  %s5 = ssub.s32 1, %s3
  %s6 = scalar_select 0, %s5, %s3
  $region1: #{tpu_custom_call.1} parent=0
    #allocation2 [shape = 'u8[512]{0}', space=vmem, size = 0x400, scoped, tag = 'output window, operand 0, single buffered']
    #allocation3 [shape = 's32[1]{0}', space=sflag, size = 0x4, scoped, tag = 'scoped memory for tpu_custom_call.1']
    %7 = vsyncpa [#allocation3], 0
    // Predicated region
    $region2: #{tpu_custom_call.1} parent=1 // pred_check
      _
    $region3: #{tpu_custom_call.1} parent=1 // pred_check_branch
      %9 = sbr.rel (0) target = $region5
    $region4: #{tpu_custom_call.1} parent=1 // pred_region
      _
    $region5: #{tpu_custom_call.1} parent=1 // pred_fallthru
      _
    // Predicated region
    $region6: #{tpu_custom_call.1} parent=1 // pred_check
      _
    $region7: #{tpu_custom_call.1} parent=1 // pred_check_branch
      %11 = sbr.rel (0) target = $region9
    $region8: #{tpu_custom_call.1} parent=1 // pred_region
      _
    $region9: #{tpu_custom_call.1} parent=1 // pred_fallthru
      _
    %v12 = vld [vmem:[%s0] sm:$0xff]
    %v13 = vld [vmem:[%s0 + $0x8] sm:$0xff]
    %v14 = vld [vmem:[%s0 + $0x10] sm:$0xff]
    %v15 = vld [vmem:[%s0 + $0x18] sm:$0xff]
    %v16 = vld [vmem:[%s0 + $0x20] sm:$0xff]
    %v17 = vld [vmem:[%s0 + $0x28] sm:$0xff]
    %v18 = vld [vmem:[%s0 + $0x30] sm:$0xff]
    %v19 = vld [vmem:[%s0 + $0x38] sm:$0xff]
    %v20 = vld [vmem:[%s1] sm:$0xff]
    %v21 = vld [vmem:[%s1 + $0x8] sm:$0xff]
    %v22 = vld [vmem:[%s1 + $0x10] sm:$0xff]
    %v23 = vld [vmem:[%s1 + $0x18] sm:$0xff]
    %v24 = vld [vmem:[%s1 + $0x20] sm:$0xff]
    %v25 = vld [vmem:[%s1 + $0x28] sm:$0xff]
    %v26 = vld [vmem:[%s1 + $0x30] sm:$0xff]
    %v27 = vld [vmem:[%s1 + $0x38] sm:$0xff]
    %v28 = vlaneseq
    %v29 = vand.u32 %v28, 127
    %v30 = vcvt.s32.f32 %v29
    %32 = vset.pattern.permute.xlu0 0
    %33 = vperm.xlu0 %32, %v20
    %v34 = vpop.permute.xlu0 %33
    %37 = vset.pattern.permute.xlu0 0
    %38 = vperm.xlu0 %37, %v21
    %v39 = vpop.permute.xlu0 %38
    %42 = vset.pattern.permute.xlu0 0
    %43 = vperm.xlu0 %42, %v22
    %v44 = vpop.permute.xlu0 %43
    %47 = vset.pattern.permute.xlu0 0
    %48 = vperm.xlu0 %47, %v23
    %v49 = vpop.permute.xlu0 %48
    %52 = vset.pattern.permute.xlu0 0
    %53 = vperm.xlu0 %52, %v24
    %v54 = vpop.permute.xlu0 %53
    %57 = vset.pattern.permute.xlu0 0
    %58 = vperm.xlu0 %57, %v25
    %v59 = vpop.permute.xlu0 %58
    %62 = vset.pattern.permute.xlu0 0
    %63 = vperm.xlu0 %62, %v26
    %v64 = vpop.permute.xlu0 %63
    %67 = vset.pattern.permute.xlu0 0
    %68 = vperm.xlu0 %67, %v27
    %v69 = vpop.permute.xlu0 %68
    %v71 = vsub.f32 %v30, %v34
    %v72 = vsub.f32 %v30, %v39
    %v73 = vsub.f32 %v30, %v44
    %v74 = vsub.f32 %v30, %v49
    %v75 = vsub.f32 %v30, %v54
    %v76 = vsub.f32 %v30, %v59
    %v77 = vsub.f32 %v30, %v64
    %v78 = vsub.f32 %v30, %v69
    %v79 = vand.u32 2147483647, %v71
    %v80 = vand.u32 2147483647, %v72
    %v81 = vand.u32 2147483647, %v73
    %v82 = vand.u32 2147483647, %v74
    %v83 = vand.u32 2147483647, %v75
    %v84 = vand.u32 2147483647, %v76
    %v85 = vand.u32 2147483647, %v77
    %v86 = vand.u32 2147483647, %v78
    %v87 = vsub.f32 1.0, %v79
    %v88 = vsub.f32 1.0, %v80
    %v89 = vsub.f32 1.0, %v81
    %v90 = vsub.f32 1.0, %v82
    %v91 = vsub.f32 1.0, %v83
    %v92 = vsub.f32 1.0, %v84
    %v93 = vsub.f32 1.0, %v85
    %v94 = vsub.f32 1.0, %v86
    %v95 = vmax.f32 %v87, 0.0
    %v96 = vmax.f32 %v88, 0.0
    %v97 = vmax.f32 %v89, 0.0
    %v98 = vmax.f32 %v90, 0.0
    %v99 = vmax.f32 %v91, 0.0
    %v100 = vmax.f32 %v92, 0.0
    %v101 = vmax.f32 %v93, 0.0
    %v102 = vmax.f32 %v94, 0.0
    %vm103 = vcmask 130048
    %v104 = vsel %vm103, %v12, -inf
    %105 = vmax.xlane.f32.xlu0 %v104
    %v106 = vpop.xlane.xlu0 %105
    %v107 = vsel %vm103, %v13, -inf
    %108 = vmax.xlane.f32.xlu0 %v107
    %v109 = vpop.xlane.xlu0 %108
    %v110 = vsel %vm103, %v14, -inf
    %111 = vmax.xlane.f32.xlu0 %v110
    %v112 = vpop.xlane.xlu0 %111
    %v113 = vsel %vm103, %v15, -inf
    %114 = vmax.xlane.f32.xlu0 %v113
    %v115 = vpop.xlane.xlu0 %114
    %v116 = vsel %vm103, %v16, -inf
    %117 = vmax.xlane.f32.xlu0 %v116
    %v118 = vpop.xlane.xlu0 %117
    %v119 = vsel %vm103, %v17, -inf
    %120 = vmax.xlane.f32.xlu0 %v119
    %v121 = vpop.xlane.xlu0 %120
    %v122 = vsel %vm103, %v18, -inf
    %123 = vmax.xlane.f32.xlu0 %v122
    %v124 = vpop.xlane.xlu0 %123
    %v125 = vsel %vm103, %v19, -inf
    %126 = vmax.xlane.f32.xlu0 %v125
    %v127 = vpop.xlane.xlu0 %126
    %v128 = vsub.f32 %v12, %v106
    %v129 = vsub.f32 %v13, %v109
    %v130 = vsub.f32 %v14, %v112
    %v131 = vsub.f32 %v15, %v115
    %v132 = vsub.f32 %v16, %v118
    %v133 = vsub.f32 %v17, %v121
    %v134 = vsub.f32 %v18, %v124
    %v135 = vsub.f32 %v19, %v127
    %v136 = vmul.f32 %v128, 1.442695
    %v137 = vpow.pop %v136
    %v138 = vmul.f32 %v129, 1.442695
    %v139 = vpow.pop %v138
    %v140 = vmul.f32 %v130, 1.442695
    %v141 = vpow.pop %v140
    %v142 = vmul.f32 %v131, 1.442695
    %v143 = vpow.pop %v142
    %v144 = vmul.f32 %v132, 1.442695
    %v145 = vpow.pop %v144
    %v146 = vmul.f32 %v133, 1.442695
    %v147 = vpow.pop %v146
    %v148 = vmul.f32 %v134, 1.442695
    %v149 = vpow.pop %v148
    %v150 = vmul.f32 %v135, 1.442695
    %v151 = vpow.pop %v150
    %v152 = vsel %vm103, %v137, 0.0
    %153 = vadd.xlane.f32.xlu0 %v152
    %v154 = vpop.xlane.xlu0 %153
    %v155 = vsel %vm103, %v139, 0.0
    %156 = vadd.xlane.f32.xlu0 %v155
    %v157 = vpop.xlane.xlu0 %156
    %v158 = vsel %vm103, %v141, 0.0
    %159 = vadd.xlane.f32.xlu0 %v158
    %v160 = vpop.xlane.xlu0 %159
    %v161 = vsel %vm103, %v143, 0.0
    %162 = vadd.xlane.f32.xlu0 %v161
    %v163 = vpop.xlane.xlu0 %162
    %v164 = vsel %vm103, %v145, 0.0
    %165 = vadd.xlane.f32.xlu0 %v164
    %v166 = vpop.xlane.xlu0 %165
    %v167 = vsel %vm103, %v147, 0.0
    %168 = vadd.xlane.f32.xlu0 %v167
    %v169 = vpop.xlane.xlu0 %168
    %v170 = vsel %vm103, %v149, 0.0
    %171 = vadd.xlane.f32.xlu0 %v170
    %v172 = vpop.xlane.xlu0 %171
    %v173 = vsel %vm103, %v151, 0.0
    %174 = vadd.xlane.f32.xlu0 %v173
    %v175 = vpop.xlane.xlu0 %174
    %v176 = vlog2.pop %v154
    %v177 = vmul.f32 %v176, 0.6931472
    %v178 = vlog2.pop %v157
    %v179 = vmul.f32 %v178, 0.6931472
    %v180 = vlog2.pop %v160
    %v181 = vmul.f32 %v180, 0.6931472
    %v182 = vlog2.pop %v163
    %v183 = vmul.f32 %v182, 0.6931472
    %v184 = vlog2.pop %v166
    %v185 = vmul.f32 %v184, 0.6931472
    %v186 = vlog2.pop %v169
    %v187 = vmul.f32 %v186, 0.6931472
    %v188 = vlog2.pop %v172
    %v189 = vmul.f32 %v188, 0.6931472
    %v190 = vlog2.pop %v175
    %v191 = vmul.f32 %v190, 0.6931472
    %v192 = vadd.f32 %v106, %v177
    %v193 = vadd.f32 %v109, %v179
    %v194 = vadd.f32 %v112, %v181
    %v195 = vadd.f32 %v115, %v183
    %v196 = vadd.f32 %v118, %v185
    %v197 = vadd.f32 %v121, %v187
    %v198 = vadd.f32 %v124, %v189
    %v199 = vadd.f32 %v127, %v191
    %v200 = vmul.f32 %v12, %v95
    %v201 = vmul.f32 %v13, %v96
    %v202 = vmul.f32 %v14, %v97
    %v203 = vmul.f32 %v15, %v98
    %v204 = vmul.f32 %v16, %v99
    %v205 = vmul.f32 %v17, %v100
    %v206 = vmul.f32 %v18, %v101
    %v207 = vmul.f32 %v19, %v102
    %v208 = vsel %vm103, %v200, 0.0
    %209 = vadd.xlane.f32.xlu0 %v208
    %v210 = vpop.xlane.xlu0 %209
    %v211 = vsel %vm103, %v201, 0.0
    %212 = vadd.xlane.f32.xlu0 %v211
    %v213 = vpop.xlane.xlu0 %212
    %v214 = vsel %vm103, %v202, 0.0
    %215 = vadd.xlane.f32.xlu0 %v214
    %v216 = vpop.xlane.xlu0 %215
    %v217 = vsel %vm103, %v203, 0.0
    %218 = vadd.xlane.f32.xlu0 %v217
    %v219 = vpop.xlane.xlu0 %218
    %v220 = vsel %vm103, %v204, 0.0
    %221 = vadd.xlane.f32.xlu0 %v220
    %v222 = vpop.xlane.xlu0 %221
    %v223 = vsel %vm103, %v205, 0.0
    %224 = vadd.xlane.f32.xlu0 %v223
    %v225 = vpop.xlane.xlu0 %224
    %v226 = vsel %vm103, %v206, 0.0
    %227 = vadd.xlane.f32.xlu0 %v226
    %v228 = vpop.xlane.xlu0 %227
    %v229 = vsel %vm103, %v207, 0.0
    %230 = vadd.xlane.f32.xlu0 %v229
    %v231 = vpop.xlane.xlu0 %230
    %v232 = vsub.f32 %v192, %v210
    %v233 = vsub.f32 %v193, %v213
    %v234 = vsub.f32 %v194, %v216
    %v235 = vsub.f32 %v195, %v219
    %v236 = vsub.f32 %v196, %v222
    %v237 = vsub.f32 %v197, %v225
    %v238 = vsub.f32 %v198, %v228
    %v239 = vsub.f32 %v199, %v231
    %vm240 = vcmask 7168
    %v241 = vsel %vm240, %v232, 0.0
    %v242 = vsel %vm240, %v233, 0.0
    %v243 = vadd.f32 %v241, %v242
    %v244 = vsel %vm240, %v234, 0.0
    %v245 = vadd.f32 %v243, %v244
    %v246 = vsel %vm240, %v235, 0.0
    %v247 = vadd.f32 %v245, %v246
    %v248 = vsel %vm240, %v236, 0.0
    %v249 = vadd.f32 %v247, %v248
    %v250 = vsel %vm240, %v237, 0.0
    %v251 = vadd.f32 %v249, %v250
    %v252 = vsel %vm240, %v238, 0.0
    %v253 = vadd.f32 %v251, %v252
    %v254 = vsel %vm240, %v239, 0.0
    %v255 = vadd.f32 %v253, %v254
    %256 = vadd.xlane.f32.xlu0 %v255
    %v257 = vpop.xlane.xlu0 %256
    %v258 = vrot.slane %v257, 4
    %v259 = vadd.f32 %v257, %v258
    %v260 = vrot.slane %v259, 2
    %v261 = vadd.f32 %v259, %v260
    %v262 = vrot.slane %v261, 1
    %v263 = vadd.f32 %v261, %v262
    %s264 = vtos %v263
    %v265 = vstv %s264
    %vm266 = vcmask 0
    %267 = vst.msk [vmem:[#allocation2] sm:$0x1] %vm266, %v265
    // Predicated region
    $region10: #{tpu_custom_call.1} parent=1 // pred_check
      _
    $region11: #{tpu_custom_call.1} parent=1 // pred_check_branch
      %269 = sbr.rel (0) target = $region13
    $region12: #{tpu_custom_call.1} parent=1 // pred_region
      %s271 = ssub.s32 16, 16
      %272 = vsyncadd [#allocation3], %s271
      %s274 = sshll.u32 [#allocation2], 4
      %s275 = int_to_ptr.vmem [resolvable:$true] %s274
      %277 = dma.vmem_to_hbm [thread:$0]  %s275, 16, %s2, [#allocation3]
    $region13: #{tpu_custom_call.1} parent=1 // pred_fallthru
      _
    // Predicated region
    $region14: #{tpu_custom_call.1} parent=1 // pred_check
      _
    $region15: #{tpu_custom_call.1} parent=1 // pred_check_branch
      %279 = sbr.rel (0) target = $region17
    $region16: #{tpu_custom_call.1} parent=1 // pred_region
      %280 = dma.done [#allocation3], 16
    $region17: #{tpu_custom_call.1} parent=1 // pred_fallthru
      _
    %281 = vsyncpa [#allocation3], 1

</llo_original>
